<compile_context>
chip_gen: v5e
topology: v5e:2x2
jax: 0.10.0
libtpu: 0.0.40
codegen_flags: <defaults>
</compile_context>

<pallas_src>
import functools

import jax
import jax.numpy as jnp
from jax.experimental import pallas as pl
from jax.experimental.pallas import tpu as pltpu

HIDDEN = 256
LANE = 128
MAX_TB = 256  # batch tile rows (multiple of 8; >=128 fills MXU rows when B is large)


def _round_up(x, m):
    return ((x + m - 1) // m) * m


def _actor_kernel(x_ref, w_ref, b_ref, out_ref, *, s_pad, a_pad, max_action):
    # Static sub-views into the packed slabs (zero runtime cost, lane-aligned).
    w1 = w_ref[0:s_pad, :]                                  # (s_pad, 256) bf16
    w2 = w_ref[s_pad:s_pad + HIDDEN, :]                     # (256, 256)  bf16
    w3 = w_ref[s_pad + HIDDEN:s_pad + 2 * HIDDEN, 0:a_pad]  # (256, a_pad) bf16
    b1 = b_ref[:, 0:HIDDEN]                                 # (1, 256) f32
    b2 = b_ref[:, HIDDEN:2 * HIDDEN]                        # (1, 256) f32
    b3 = b_ref[:, 2 * HIDDEN:2 * HIDDEN + a_pad]            # (1, a_pad) f32

    # MXU operands in bf16, accumulation + elementwise math in f32.
    x = x_ref[...].astype(jnp.bfloat16)
    h1 = jnp.dot(x, w1, preferred_element_type=jnp.float32)
    h1 = jnp.maximum(h1 + b1, 0.0)

    h2 = jnp.dot(h1.astype(jnp.bfloat16), w2, preferred_element_type=jnp.float32)
    h2 = jnp.maximum(h2 + b2, 0.0)

    y = jnp.dot(h2.astype(jnp.bfloat16), w3, preferred_element_type=jnp.float32)
    y = max_action * jnp.tanh(y + b3)

    out_ref[...] = y.astype(out_ref.dtype)


def pack_params(params):
    """Pack (W1,b1,W2,b2,W3,b3) into one bf16 weight slab + one f32 bias slab.

    Do this once at init / weight-update time, not per forward call.
    """
    state_dim = params["W1"].shape[0]
    action_dim = params["W3"].shape[1]
    s_pad = _round_up(state_dim, LANE)
    a_pad = _round_up(action_dim, LANE)

    w_slab = jnp.zeros((s_pad + 2 * HIDDEN, HIDDEN), jnp.bfloat16)
    w_slab = w_slab.at[0:state_dim, :].set(params["W1"].astype(jnp.bfloat16))
    w_slab = w_slab.at[s_pad:s_pad + HIDDEN, :].set(params["W2"].astype(jnp.bfloat16))
    w_slab = w_slab.at[s_pad + HIDDEN:s_pad + 2 * HIDDEN, 0:action_dim].set(
        params["W3"].astype(jnp.bfloat16))

    b_slab = jnp.zeros((1, 2 * HIDDEN + a_pad), jnp.float32)
    b_slab = b_slab.at[:, 0:HIDDEN].set(params["b1"][0])
    b_slab = b_slab.at[:, HIDDEN:2 * HIDDEN].set(params["b2"][0])
    b_slab = b_slab.at[:, 2 * HIDDEN:2 * HIDDEN + action_dim].set(params["b3"][0])

    return {
        "w_slab": w_slab,
        "b_slab": b_slab,
        "state_dim": state_dim,
        "action_dim": action_dim,
        "s_pad": s_pad,
        "a_pad": a_pad,
    }


def actor_forward(state, packed, max_action):
    """state: (B, state_dim) f32; packed: output of pack_params()."""
    B, state_dim = state.shape
    assert state_dim == packed["state_dim"]
    s_pad, a_pad = packed["s_pad"], packed["a_pad"]
    action_dim = packed["action_dim"]

    # Batch tiling: tb is a multiple of 8, capped at MAX_TB rows so
    # double-buffered state/out tiles stay small even on v7x's 64 MiB VMEM.
    tb = min(MAX_TB, _round_up(B, 8))
    b_pad = _round_up(B, tb)

    # Pad state to a lane-dense (b_pad, s_pad) slab (zero-padded rows/cols
    # contribute nothing because the matching W1 rows are zero).
    x = jnp.zeros((b_pad, s_pad), jnp.float32).at[:B, :state_dim].set(state)

    kernel = functools.partial(
        _actor_kernel, s_pad=s_pad, a_pad=a_pad, max_action=float(max_action))

    out = pl.pallas_call(
        kernel,
        out_shape=jax.ShapeDtypeStruct((b_pad, a_pad), jnp.float32),
        grid=(b_pad // tb,),
        in_specs=[
            pl.BlockSpec((tb, s_pad), lambda i: (i, 0)),
            # Constant index_map -> weight/bias slabs stay VMEM-resident
            # across batch-grid iterations.
            pl.BlockSpec(packed["w_slab"].shape, lambda i: (0, 0)),
            pl.BlockSpec(packed["b_slab"].shape, lambda i: (0, 0)),
        ],
        out_specs=pl.BlockSpec((tb, a_pad), lambda i: (i, 0)),
        compiler_params=pltpu.CompilerParams(
            dimension_semantics=("parallel",)),
    )(x, packed["w_slab"], packed["b_slab"])

    return out[:B, :action_dim]


def init_params(key, state_dim, action_dim):
    """Deterministic init mimicking PyTorch nn.Linear (uniform +/- 1/sqrt(fan_in)).

    Weights are stored as (in_dim, out_dim) so the kernel computes y = x @ W + b.
    """
    ks = jax.random.split(key, 6)

    def linear(kw, kb, fan_in, fan_out):
        bound = 1.0 / jnp.sqrt(fan_in)
        W = jax.random.uniform(kw, (fan_in, fan_out), jnp.float32, -bound, bound)
        b = jax.random.uniform(kb, (1, fan_out), jnp.float32, -bound, bound)
        return W, b

    W1, b1 = linear(ks[0], ks[1], state_dim, HIDDEN)
    W2, b2 = linear(ks[2], ks[3], HIDDEN, HIDDEN)
    W3, b3 = linear(ks[4], ks[5], HIDDEN, action_dim)
    return {"W1": W1, "b1": b1, "W2": W2, "b2": b2, "W3": W3, "b3": b3}


def actor_forward_ref(state, params, max_action):
    """Pure-JAX reference mirroring the kernel's bf16-weight / f32-accumulate math."""
    bf = lambda a: a.astype(jnp.bfloat16)
    h1 = jax.nn.relu(
        jnp.dot(bf(state), bf(params["W1"]), preferred_element_type=jnp.float32)
        + params["b1"])
    h2 = jax.nn.relu(
        jnp.dot(bf(h1), bf(params["W2"]), preferred_element_type=jnp.float32)
        + params["b2"])
    y = (jnp.dot(bf(h2), bf(params["W3"]), preferred_element_type=jnp.float32)
         + params["b3"])
    return max_action * jnp.tanh(y)


if __name__ == "__main__":
    state_dim = 32
    action_dim = 8
    batch = 8
    max_action = 2.0

    key = jax.random.PRNGKey(0)
    k_params, k_state = jax.random.split(key)
    params = init_params(k_params, state_dim, action_dim)
    state = jax.random.normal(k_state, (batch, state_dim), jnp.float32)

    packed = pack_params(params)  # one-time packing, outside the hot path

    out = actor_forward(state, packed, max_action)
    out = jax.block_until_ready(out)

    ref = actor_forward_ref(state, params, max_action)
    assert out.shape == (batch, action_dim)
    assert jnp.allclose(out, ref, atol=1e-2, rtol=1e-2), "mismatch vs reference"

    print("KERNEL_OK")
</pallas_src>

<mosaic_0001>
module attributes {stable_mosaic.version = 11 : i64} {
  func.func @_actor_kernel(%arg0: i32, %arg1: memref<8x128xf32, #tpu.memory_space<vmem>>, %arg2: memref<640x256xbf16, #tpu.memory_space<vmem>>, %arg3: memref<1x640xf32, #tpu.memory_space<vmem>>, %arg4: memref<8x128xf32, #tpu.memory_space<vmem>>) attributes {dimension_semantics = [#tpu.dimension_semantics<parallel>], iteration_bounds = array<i64: 1>, scalar_prefetch = 0 : i64, scratch_operands = 0 : i64, tpu.core_type = #tpu.core_type<tc>, window_params = [{transform_indices = @transform_0, window_bounds = array<i64: 8, 128>}, {pipeline_mode = #tpu.pipeline_mode<synchronous>, transform_indices = @transform_1, window_bounds = array<i64: 640, 256>}, {pipeline_mode = #tpu.pipeline_mode<synchronous>, transform_indices = @transform_2, window_bounds = array<i64: 1, 640>}, {transform_indices = @transform_3, window_bounds = array<i64: 8, 128>}]} {
    %c0 = arith.constant 0 : index
    %c0_0 = arith.constant 0 : index
    %0 = vector.load %arg2[%c0, %c0_0] : memref<640x256xbf16, #tpu.memory_space<vmem>>, vector<128x256xbf16>
    %c128 = arith.constant 128 : index
    %c0_1 = arith.constant 0 : index
    %1 = vector.load %arg2[%c128, %c0_1] : memref<640x256xbf16, #tpu.memory_space<vmem>>, vector<256x256xbf16>
    %c384 = arith.constant 384 : index
    %c0_2 = arith.constant 0 : index
    %2 = vector.load %arg2[%c384, %c0_2] : memref<640x256xbf16, #tpu.memory_space<vmem>>, vector<256x128xbf16>
    %c0_3 = arith.constant 0 : index
    %c0_4 = arith.constant 0 : index
    %3 = vector.load %arg3[%c0_3, %c0_4] : memref<1x640xf32, #tpu.memory_space<vmem>>, vector<1x256xf32>
    %c0_5 = arith.constant 0 : index
    %c256 = arith.constant 256 : index
    %4 = vector.load %arg3[%c0_5, %c256] : memref<1x640xf32, #tpu.memory_space<vmem>>, vector<1x256xf32>
    %c0_6 = arith.constant 0 : index
    %c512 = arith.constant 512 : index
    %5 = vector.load %arg3[%c0_6, %c512] : memref<1x640xf32, #tpu.memory_space<vmem>>, vector<1x128xf32>
    %c0_7 = arith.constant 0 : index
    %c0_8 = arith.constant 0 : index
    %6 = vector.load %arg1[%c0_7, %c0_8] : memref<8x128xf32, #tpu.memory_space<vmem>>, vector<8x128xf32>
    %7 = arith.truncf %6 : vector<8x128xf32> to vector<8x128xbf16>
    %cst = arith.constant dense<0.000000e+00> : vector<8x256xf32>
    %8 = tpu.matmul %7, %0, %cst {dimension_numbers = #tpu.dot_dimension_numbers<[1], [0], [0], [1], [0, 0, 1, 1], [], []>} : vector<8x128xbf16>, vector<128x256xbf16>, vector<8x256xf32> -> vector<8x256xf32>
    %9 = vector.broadcast %3 : vector<1x256xf32> to vector<8x256xf32>
    %10 = arith.addf %8, %9 : vector<8x256xf32>
    %cst_9 = arith.constant 0.000000e+00 : f32
    %11 = vector.broadcast %cst_9 : f32 to vector<8x256xf32>
    %12 = arith.maximumf %10, %11 : vector<8x256xf32>
    %13 = arith.truncf %12 : vector<8x256xf32> to vector<8x256xbf16>
    %cst_10 = arith.constant dense<0.000000e+00> : vector<8x256xf32>
    %14 = tpu.matmul %13, %1, %cst_10 {dimension_numbers = #tpu.dot_dimension_numbers<[1], [0], [0], [1], [0, 0, 1, 1], [], []>} : vector<8x256xbf16>, vector<256x256xbf16>, vector<8x256xf32> -> vector<8x256xf32>
    %15 = vector.broadcast %4 : vector<1x256xf32> to vector<8x256xf32>
    %16 = arith.addf %14, %15 : vector<8x256xf32>
    %cst_11 = arith.constant 0.000000e+00 : f32
    %17 = vector.broadcast %cst_11 : f32 to vector<8x256xf32>
    %18 = arith.maximumf %16, %17 : vector<8x256xf32>
    %19 = arith.truncf %18 : vector<8x256xf32> to vector<8x256xbf16>
    %cst_12 = arith.constant dense<0.000000e+00> : vector<8x128xf32>
    %20 = tpu.matmul %19, %2, %cst_12 {dimension_numbers = #tpu.dot_dimension_numbers<[1], [0], [0], [1], [0, 0, 1, 1], [], []>} : vector<8x256xbf16>, vector<256x128xbf16>, vector<8x128xf32> -> vector<8x128xf32>
    %21 = vector.broadcast %5 : vector<1x128xf32> to vector<8x128xf32>
    %22 = arith.addf %20, %21 : vector<8x128xf32>
    %23 = math.tanh %22 : vector<8x128xf32>
    %cst_13 = arith.constant 2.000000e+00 : f32
    %24 = vector.broadcast %cst_13 : f32 to vector<8x128xf32>
    %25 = arith.mulf %24, %23 : vector<8x128xf32>
    %c0_14 = arith.constant 0 : index
    %c0_15 = arith.constant 0 : index
    %26 = vector.load %arg4[%c0_14, %c0_15] : memref<8x128xf32, #tpu.memory_space<vmem>>, vector<8x128xf32>
    tpu.vector_store %arg4[%c0_14, %c0_15], %25 {strides = array<i32>} : memref<8x128xf32, #tpu.memory_space<vmem>>, vector<8x128xf32>,
    return
  }
  func.func @transform_0(%arg0: i32) -> (i32, i32) {
    %c0_i32 = arith.constant 0 : i32
    %c0_i32_0 = arith.constant 0 : i32
    return %arg0, %c0_i32 : i32, i32
  }
  func.func @transform_1(%arg0: i32) -> (i32, i32) {
    %c0_i32 = arith.constant 0 : i32
    %c0_i32_0 = arith.constant 0 : i32
    %c0_i32_1 = arith.constant 0 : i32
    return %c0_i32, %c0_i32_0 : i32, i32
  }
  func.func @transform_2(%arg0: i32) -> (i32, i32) {
    %c0_i32 = arith.constant 0 : i32
    %c0_i32_0 = arith.constant 0 : i32
    %c0_i32_1 = arith.constant 0 : i32
    return %c0_i32, %c0_i32_0 : i32, i32
  }
  func.func @transform_3(%arg0: i32) -> (i32, i32) {
    %c0_i32 = arith.constant 0 : i32
    %c0_i32_0 = arith.constant 0 : i32
    return %arg0, %c0_i32 : i32, i32
  }
}

</mosaic_0001>

<llo_original>
// kernel: tpu_custom_call.1
$region0: #{tpu_custom_call.1}
  #allocation0 [shape = 'u32[]', space=smem, size = 0x4, offset = 0x4, fixed_abs, tag = 'smem constant byte address 0x4 - core index']
  #allocation1 [shape = 'u32[72,128]{1,0:T(1,128)}', space=vmem, size = 0x9000, scoped, tag = 'internal scratch']
  %s0 = inlined_call_operand.hbm [shape: f32[8,128], index: 0, kind: input, shape index: {}]
  %s1 = inlined_call_operand.hbm [shape: bf16[640,256], index: 1, kind: input, shape index: {}]
  %s2 = inlined_call_operand.hbm [shape: f32[1,640], index: 2, kind: input, shape index: {}]
  %s3 = inlined_call_operand.hbm [shape: f32[8,128], index: 3, kind: output, shape index: {}]
  %s4 = sld [smem:[#allocation0]]
  $region34: #{tpu_custom_call.1} parent=0
    _
  %s6 = ssub.s32 1, %s4
  %s7 = scalar_select 0, %s6, %s4
  $region1: #{tpu_custom_call.1} parent=0
    #allocation2 [shape = 'u8[4096]{0}', space=vmem, size = 0x1000, scoped, tag = 'input window, operand 0, single buffered']
    #allocation3 [shape = 's32[1]{0}', space=sflag, size = 0x4, scoped, tag = 'scoped memory for tpu_custom_call.1']
    #allocation4 [shape = 's32[1]{0}', space=sflag, size = 0x4, scoped, tag = 'scoped memory for tpu_custom_call.1']
    #allocation5 [shape = 'u8[327680]{0}', space=vmem, size = 0x50000, scoped, tag = 'input window, operand 1, single buffered']
    #allocation6 [shape = 's32[1]{0}', space=sflag, size = 0x4, scoped, tag = 'scoped memory for tpu_custom_call.1']
    #allocation7 [shape = 'u8[2560]{0}', space=vmem, size = 0xc00, scoped, tag = 'input window, operand 2, single buffered']
    #allocation8 [shape = 'u8[4096]{0}', space=vmem, size = 0x1000, scoped, tag = 'output window, operand 0, single buffered']
    %8 = vsyncpa [#allocation3], 0
    %9 = vsyncpa [#allocation6], 0
    %10 = vsyncpa [#allocation4], 0
    // Predicated region
    $region2: #{tpu_custom_call.1} parent=1 // pred_check
      _
    $region3: #{tpu_custom_call.1} parent=1 // pred_check_branch
      %12 = sbr.rel (0) target = $region5
    $region4: #{tpu_custom_call.1} parent=1 // pred_region
      %14 = vsyncadd [#allocation3], 0
      %s16 = sshll.u32 %s0, 4
      %s17 = int_to_ptr.hbm [resolvable:$true] %s16
      %s18 = sshll.u32 [#allocation2], 4
      %s19 = int_to_ptr.vmem [resolvable:$true] %s18
      %21 = dma.hbm_to_vmem [thread:$0]  %s17, 128, %s19, [#allocation3]
    $region5: #{tpu_custom_call.1} parent=1 // pred_fallthru
      _
    // Predicated region
    $region6: #{tpu_custom_call.1} parent=1 // pred_check
      _
    $region7: #{tpu_custom_call.1} parent=1 // pred_check_branch
      %23 = sbr.rel (0) target = $region9
    $region8: #{tpu_custom_call.1} parent=1 // pred_region
      %25 = vsyncadd [#allocation6], 0
      %s26 = sshll.u32 %s1, 4
      %s27 = int_to_ptr.hbm [resolvable:$true] %s26
      %s28 = sshll.u32 [#allocation5], 4
      %s29 = int_to_ptr.vmem [resolvable:$true] %s28
      %34 = dma.hbm_to_vmem [thread:$0]  %s27, 10240, %s29, [#allocation6], 128, 128, 8
    $region9: #{tpu_custom_call.1} parent=1 // pred_fallthru
      _
    // Predicated region
    $region10: #{tpu_custom_call.1} parent=1 // pred_check
      _
    $region11: #{tpu_custom_call.1} parent=1 // pred_check_branch
      %36 = sbr.rel (0) target = $region13
    $region12: #{tpu_custom_call.1} parent=1 // pred_region
      %38 = vsyncadd [#allocation6], 0
      %s40 = sshll.u32 %s2, 4
      %s41 = int_to_ptr.hbm [resolvable:$true] %s40
      %s42 = sshll.u32 [#allocation7], 4
      %s43 = int_to_ptr.vmem [resolvable:$true] %s42
      %45 = dma.hbm_to_vmem [thread:$0]  %s41, 80, %s43, [#allocation6]
    $region13: #{tpu_custom_call.1} parent=1 // pred_fallthru
      _
    // Predicated region
    $region14: #{tpu_custom_call.1} parent=1 // pred_check
      _
    $region15: #{tpu_custom_call.1} parent=1 // pred_check_branch
      %47 = sbr.rel (0) target = $region17
    $region16: #{tpu_custom_call.1} parent=1 // pred_region
      %49 = dma.done [#allocation3], 128
    $region17: #{tpu_custom_call.1} parent=1 // pred_fallthru
      _
    // Predicated region
    $region18: #{tpu_custom_call.1} parent=1 // pred_check
      _
    $region19: #{tpu_custom_call.1} parent=1 // pred_check_branch
      %51 = sbr.rel (0) target = $region21
    $region20: #{tpu_custom_call.1} parent=1 // pred_region
      %53 = dma.done [#allocation6], 10240
    $region21: #{tpu_custom_call.1} parent=1 // pred_fallthru
      _
    // Predicated region
    $region22: #{tpu_custom_call.1} parent=1 // pred_check
      _
    $region23: #{tpu_custom_call.1} parent=1 // pred_check_branch
      %55 = sbr.rel (0) target = $region25
    $region24: #{tpu_custom_call.1} parent=1 // pred_region
      %57 = dma.done [#allocation6], 80
    $region25: #{tpu_custom_call.1} parent=1 // pred_fallthru
      _
    %v58 = vld [vmem:[#allocation5] sm:$0xff]
    %v59 = vld [vmem:[#allocation5 + $0x8] sm:$0xff]
    %v60 = vld [vmem:[#allocation5 + $0x10] sm:$0xff]
    %v61 = vld [vmem:[#allocation5 + $0x18] sm:$0xff]
    %v62 = vld [vmem:[#allocation5 + $0x20] sm:$0xff]
    %v63 = vld [vmem:[#allocation5 + $0x28] sm:$0xff]
    %v64 = vld [vmem:[#allocation5 + $0x30] sm:$0xff]
    %v65 = vld [vmem:[#allocation5 + $0x38] sm:$0xff]
    %v66 = vld [vmem:[#allocation5 + $0x40] sm:$0xff]
    %v67 = vld [vmem:[#allocation5 + $0x48] sm:$0xff]
    %v68 = vld [vmem:[#allocation5 + $0x50] sm:$0xff]
    %v69 = vld [vmem:[#allocation5 + $0x58] sm:$0xff]
    %v70 = vld [vmem:[#allocation5 + $0x60] sm:$0xff]
    %v71 = vld [vmem:[#allocation5 + $0x68] sm:$0xff]
    %v72 = vld [vmem:[#allocation5 + $0x70] sm:$0xff]
    %v73 = vld [vmem:[#allocation5 + $0x78] sm:$0xff]
    %v74 = vld [vmem:[#allocation5 + $0x80] sm:$0xff]
    %v75 = vld [vmem:[#allocation5 + $0x88] sm:$0xff]
    %v76 = vld [vmem:[#allocation5 + $0x90] sm:$0xff]
    %v77 = vld [vmem:[#allocation5 + $0x98] sm:$0xff]
    %v78 = vld [vmem:[#allocation5 + $0xa0] sm:$0xff]
    %v79 = vld [vmem:[#allocation5 + $0xa8] sm:$0xff]
    %v80 = vld [vmem:[#allocation5 + $0xb0] sm:$0xff]
    %v81 = vld [vmem:[#allocation5 + $0xb8] sm:$0xff]
    %v82 = vld [vmem:[#allocation5 + $0xc0] sm:$0xff]
    %v83 = vld [vmem:[#allocation5 + $0xc8] sm:$0xff]
    %v84 = vld [vmem:[#allocation5 + $0xd0] sm:$0xff]
    %v85 = vld [vmem:[#allocation5 + $0xd8] sm:$0xff]
    %v86 = vld [vmem:[#allocation5 + $0xe0] sm:$0xff]
    %v87 = vld [vmem:[#allocation5 + $0xe8] sm:$0xff]
    %v88 = vld [vmem:[#allocation5 + $0xf0] sm:$0xff]
    %v89 = vld [vmem:[#allocation5 + $0xf8] sm:$0xff]
    %v90 = vld [vmem:[#allocation5 + $0x100] sm:$0xff]
    %v91 = vld [vmem:[#allocation5 + $0x108] sm:$0xff]
    %v92 = vld [vmem:[#allocation5 + $0x110] sm:$0xff]
    %v93 = vld [vmem:[#allocation5 + $0x118] sm:$0xff]
    %v94 = vld [vmem:[#allocation5 + $0x120] sm:$0xff]
    %v95 = vld [vmem:[#allocation5 + $0x128] sm:$0xff]
    %v96 = vld [vmem:[#allocation5 + $0x130] sm:$0xff]
    %v97 = vld [vmem:[#allocation5 + $0x138] sm:$0xff]
    %v98 = vld [vmem:[#allocation5 + $0x140] sm:$0xff]
    %v99 = vld [vmem:[#allocation5 + $0x148] sm:$0xff]
    %v100 = vld [vmem:[#allocation5 + $0x150] sm:$0xff]
    %v101 = vld [vmem:[#allocation5 + $0x158] sm:$0xff]
    %v102 = vld [vmem:[#allocation5 + $0x160] sm:$0xff]
    %v103 = vld [vmem:[#allocation5 + $0x168] sm:$0xff]
    %v104 = vld [vmem:[#allocation5 + $0x170] sm:$0xff]
    %v105 = vld [vmem:[#allocation5 + $0x178] sm:$0xff]
    %v106 = vld [vmem:[#allocation5 + $0x180] sm:$0xf]
    %v107 = vld [vmem:[#allocation5 + $0x188] sm:$0xf]
    %v108 = vld [vmem:[#allocation5 + $0x190] sm:$0xf]
    %v109 = vld [vmem:[#allocation5 + $0x198] sm:$0xf]
    %v110 = vld [vmem:[#allocation5 + $0x1a0] sm:$0xf]
    %v111 = vld [vmem:[#allocation5 + $0x1a8] sm:$0xf]
    %v112 = vld [vmem:[#allocation5 + $0x1b0] sm:$0xf]
    %v113 = vld [vmem:[#allocation5 + $0x1b8] sm:$0xf]
    %v114 = vld [vmem:[#allocation5 + $0x1c0] sm:$0xf]
    %v115 = vld [vmem:[#allocation5 + $0x1c8] sm:$0xf]
    %v116 = vld [vmem:[#allocation5 + $0x1d0] sm:$0xf]
    %v117 = vld [vmem:[#allocation5 + $0x1d8] sm:$0xf]
    %v118 = vld [vmem:[#allocation5 + $0x1e0] sm:$0xf]
    %v119 = vld [vmem:[#allocation5 + $0x1e8] sm:$0xf]
    %v120 = vld [vmem:[#allocation5 + $0x1f0] sm:$0xf]
    %v121 = vld [vmem:[#allocation5 + $0x1f8] sm:$0xf]
    %v122 = vld [vmem:[#allocation5 + $0x200] sm:$0xf]
    %v123 = vld [vmem:[#allocation5 + $0x208] sm:$0xf]
    %v124 = vld [vmem:[#allocation5 + $0x210] sm:$0xf]
    %v125 = vld [vmem:[#allocation5 + $0x218] sm:$0xf]
    %v126 = vld [vmem:[#allocation5 + $0x220] sm:$0xf]
    %v127 = vld [vmem:[#allocation5 + $0x228] sm:$0xf]
    %v128 = vld [vmem:[#allocation5 + $0x230] sm:$0xf]
    %v129 = vld [vmem:[#allocation5 + $0x238] sm:$0xf]
    %v130 = vld [vmem:[#allocation5 + $0x240] sm:$0xf]
    %v131 = vld [vmem:[#allocation5 + $0x248] sm:$0xf]
    %v132 = vld [vmem:[#allocation5 + $0x250] sm:$0xf]
    %v133 = vld [vmem:[#allocation5 + $0x258] sm:$0xf]
    %v134 = vld [vmem:[#allocation5 + $0x260] sm:$0xf]
    %v135 = vld [vmem:[#allocation5 + $0x268] sm:$0xf]
    %v136 = vld [vmem:[#allocation5 + $0x270] sm:$0xf]
    %v137 = vld [vmem:[#allocation5 + $0x278] sm:$0xf]
    %v138 = vld [vmem:[#allocation7] sm:$0x3]
    %v139 = vld [vmem:[#allocation7 + $0x2] sm:$0x3]
    %v140 = vld [vmem:[#allocation7 + $0x4] sm:$0x1]
    %v141 = vld [vmem:[#allocation2] sm:$0xff]
    %v142 = vpack.c.bf16 %v141, %v141
    %v144 = vperm.slane %v138, 0
    %v145 = vperm.slane %v138, 1
    %v164 = vunpack.c.l.b16 %v58
    %v165 = vunpack.c.h.b16 %v58
    %v166 = vunpack.c.l.b16 %v59
    %v167 = vunpack.c.h.b16 %v59
    %v168 = vunpack.c.l.b16 %v60
    %v169 = vunpack.c.h.b16 %v60
    %v170 = vunpack.c.l.b16 %v61
    %v171 = vunpack.c.h.b16 %v61
    %v172 = vunpack.c.l.b16 %v62
    %v173 = vunpack.c.h.b16 %v62
    %v174 = vunpack.c.l.b16 %v63
    %v175 = vunpack.c.h.b16 %v63
    %v176 = vunpack.c.l.b16 %v64
    %v177 = vunpack.c.h.b16 %v64
    %v178 = vunpack.c.l.b16 %v65
    %v179 = vunpack.c.h.b16 %v65
    %v180 = vunpack.c.l.b16 %v66
    %v181 = vunpack.c.h.b16 %v66
    %v182 = vunpack.c.l.b16 %v67
    %v183 = vunpack.c.h.b16 %v67
    %v184 = vunpack.c.l.b16 %v68
    %v185 = vunpack.c.h.b16 %v68
    %v186 = vunpack.c.l.b16 %v69
    %v187 = vunpack.c.h.b16 %v69
    %v188 = vunpack.c.l.b16 %v70
    %v189 = vunpack.c.h.b16 %v70
    %v190 = vunpack.c.l.b16 %v71
    %v191 = vunpack.c.h.b16 %v71
    %v192 = vunpack.c.l.b16 %v72
    %v193 = vunpack.c.h.b16 %v72
    %v194 = vunpack.c.l.b16 %v73
    %v195 = vunpack.c.h.b16 %v73
    %v196 = vpack.c.b16 %v166, %v164
    %v197 = vpack.c.b16 %v167, %v165
    %v198 = vpack.c.b16 %v170, %v168
    %v199 = vpack.c.b16 %v171, %v169
    %v200 = vpack.c.b16 %v174, %v172
    %v201 = vpack.c.b16 %v175, %v173
    %v202 = vpack.c.b16 %v178, %v176
    %v203 = vpack.c.b16 %v179, %v177
    %v204 = vpack.c.b16 %v182, %v180
    %v205 = vpack.c.b16 %v183, %v181
    %v206 = vpack.c.b16 %v186, %v184
    %v207 = vpack.c.b16 %v187, %v185
    %v208 = vpack.c.b16 %v190, %v188
    %v209 = vpack.c.b16 %v191, %v189
    %v210 = vpack.c.b16 %v194, %v192
    %v211 = vpack.c.b16 %v195, %v193
    %228 = vmatpush.bf16.msra.mxu0 %v210
    %229 = vmatpush.bf16.msra.mxu0 %v208
    %230 = vmatpush.bf16.msra.mxu0 %v206
    %231 = vmatpush.bf16.msra.mxu0 %v204
    %232 = vmatpush.bf16.msra.mxu0 %v202
    %233 = vmatpush.bf16.msra.mxu0 %v200
    %234 = vmatpush.bf16.msra.mxu0 %v198
    %235 = vmatpush.bf16.msra.mxu0 %v196
    %236 = vmatmul.bf16.gmra.mxu0 %v142
    %v237 = vpop.f32.mrf.mxu0
    %v238 = vadd.f32 %v144, %v237
    %v239 = vpop.f32.mrf.mxu0
    %240 = vdwg.mxu0
    %241 = vmatpush.bf16.msra.mxu0 %v211
    %242 = vmatpush.bf16.msra.mxu0 %v209
    %243 = vmatpush.bf16.msra.mxu0 %v207
    %244 = vmatpush.bf16.msra.mxu0 %v205
    %245 = vmatpush.bf16.msra.mxu0 %v203
    %246 = vmatpush.bf16.msra.mxu0 %v201
    %247 = vmatpush.bf16.msra.mxu0 %v199
    %248 = vmatpush.bf16.msra.mxu0 %v197
    %249 = vmatmul.bf16.gmra.mxu0 %v142
    %v250 = vpop.f32.mrf.mxu0
    %v251 = vadd.f32 %v145, %v250
    %v252 = vpop.f32.mrf.mxu0
    %253 = vdwg.mxu0
    %v254 = vmax.f32 %v238, 0.0
    %v255 = vmax.f32 %v251, 0.0
    %v256 = vpack.c.bf16 %v254, %v254
    %v257 = vpack.c.bf16 %v255, %v255
    %v259 = vperm.slane %v139, 0
    %v260 = vperm.slane %v139, 1
    %v295 = vunpack.c.l.b16 %v74
    %v296 = vunpack.c.h.b16 %v74
    %v297 = vunpack.c.l.b16 %v75
    %v298 = vunpack.c.h.b16 %v75
    %v299 = vunpack.c.l.b16 %v76
    %v300 = vunpack.c.h.b16 %v76
    %v301 = vunpack.c.l.b16 %v77
    %v302 = vunpack.c.h.b16 %v77
    %v303 = vunpack.c.l.b16 %v78
    %v304 = vunpack.c.h.b16 %v78
    %v305 = vunpack.c.l.b16 %v79
    %v306 = vunpack.c.h.b16 %v79
    %v307 = vunpack.c.l.b16 %v80
    %v308 = vunpack.c.h.b16 %v80
    %v309 = vunpack.c.l.b16 %v81
    %v310 = vunpack.c.h.b16 %v81
    %v311 = vunpack.c.l.b16 %v82
    %v312 = vunpack.c.h.b16 %v82
    %v313 = vunpack.c.l.b16 %v83
    %v314 = vunpack.c.h.b16 %v83
    %v315 = vunpack.c.l.b16 %v84
    %v316 = vunpack.c.h.b16 %v84
    %v317 = vunpack.c.l.b16 %v85
    %v318 = vunpack.c.h.b16 %v85
    %v319 = vunpack.c.l.b16 %v86
    %v320 = vunpack.c.h.b16 %v86
    %v321 = vunpack.c.l.b16 %v87
    %v322 = vunpack.c.h.b16 %v87
    %v323 = vunpack.c.l.b16 %v88
    %v324 = vunpack.c.h.b16 %v88
    %v325 = vunpack.c.l.b16 %v89
    %v326 = vunpack.c.h.b16 %v89
    %v327 = vunpack.c.l.b16 %v90
    %v328 = vunpack.c.h.b16 %v90
    %v329 = vunpack.c.l.b16 %v91
    %v330 = vunpack.c.h.b16 %v91
    %v331 = vunpack.c.l.b16 %v92
    %v332 = vunpack.c.h.b16 %v92
    %v333 = vunpack.c.l.b16 %v93
    %v334 = vunpack.c.h.b16 %v93
    %v335 = vunpack.c.l.b16 %v94
    %v336 = vunpack.c.h.b16 %v94
    %v337 = vunpack.c.l.b16 %v95
    %v338 = vunpack.c.h.b16 %v95
    %v339 = vunpack.c.l.b16 %v96
    %v340 = vunpack.c.h.b16 %v96
    %v341 = vunpack.c.l.b16 %v97
    %v342 = vunpack.c.h.b16 %v97
    %v343 = vunpack.c.l.b16 %v98
    %v344 = vunpack.c.h.b16 %v98
    %v345 = vunpack.c.l.b16 %v99
    %v346 = vunpack.c.h.b16 %v99
    %v347 = vunpack.c.l.b16 %v100
    %v348 = vunpack.c.h.b16 %v100
    %v349 = vunpack.c.l.b16 %v101
    %v350 = vunpack.c.h.b16 %v101
    %v351 = vunpack.c.l.b16 %v102
    %v352 = vunpack.c.h.b16 %v102
    %v353 = vunpack.c.l.b16 %v103
    %v354 = vunpack.c.h.b16 %v103
    %v355 = vunpack.c.l.b16 %v104
    %v356 = vunpack.c.h.b16 %v104
    %v357 = vunpack.c.l.b16 %v105
    %v358 = vunpack.c.h.b16 %v105
    %v359 = vpack.c.b16 %v297, %v295
    %v360 = vpack.c.b16 %v298, %v296
    %v361 = vpack.c.b16 %v301, %v299
    %v362 = vpack.c.b16 %v302, %v300
    %v363 = vpack.c.b16 %v305, %v303
    %v364 = vpack.c.b16 %v306, %v304
    %v365 = vpack.c.b16 %v309, %v307
    %v366 = vpack.c.b16 %v310, %v308
    %v367 = vpack.c.b16 %v313, %v311
    %v368 = vpack.c.b16 %v314, %v312
    %v369 = vpack.c.b16 %v317, %v315
    %v370 = vpack.c.b16 %v318, %v316
    %v371 = vpack.c.b16 %v321, %v319
    %v372 = vpack.c.b16 %v322, %v320
    %v373 = vpack.c.b16 %v325, %v323
    %v374 = vpack.c.b16 %v326, %v324
    %v375 = vpack.c.b16 %v329, %v327
    %v376 = vpack.c.b16 %v330, %v328
    %v377 = vpack.c.b16 %v333, %v331
    %v378 = vpack.c.b16 %v334, %v332
    %v379 = vpack.c.b16 %v337, %v335
    %v380 = vpack.c.b16 %v338, %v336
    %v381 = vpack.c.b16 %v341, %v339
    %v382 = vpack.c.b16 %v342, %v340
    %v383 = vpack.c.b16 %v345, %v343
    %v384 = vpack.c.b16 %v346, %v344
    %v385 = vpack.c.b16 %v349, %v347
    %v386 = vpack.c.b16 %v350, %v348
    %v387 = vpack.c.b16 %v353, %v351
    %v388 = vpack.c.b16 %v354, %v352
    %v389 = vpack.c.b16 %v357, %v355
    %v390 = vpack.c.b16 %v358, %v356
    %423 = vmatpush.bf16.msra.mxu0 %v373
    %424 = vmatpush.bf16.msra.mxu0 %v371
    %425 = vmatpush.bf16.msra.mxu0 %v369
    %426 = vmatpush.bf16.msra.mxu0 %v367
    %427 = vmatpush.bf16.msra.mxu0 %v365
    %428 = vmatpush.bf16.msra.mxu0 %v363
    %429 = vmatpush.bf16.msra.mxu0 %v361
    %430 = vmatpush.bf16.msra.mxu0 %v359
    %431 = vmatmul.bf16.gmra.mxu0 %v256
    %v432 = vpop.f32.mrf.mxu0
    %v433 = vadd.f32 %v259, %v432
    %v434 = vpop.f32.mrf.mxu0
    %435 = vdwg.mxu0
    %436 = vmatpush.bf16.msra.mxu0 %v389
    %437 = vmatpush.bf16.msra.mxu0 %v387
    %438 = vmatpush.bf16.msra.mxu0 %v385
    %439 = vmatpush.bf16.msra.mxu0 %v383
    %440 = vmatpush.bf16.msra.mxu0 %v381
    %441 = vmatpush.bf16.msra.mxu0 %v379
    %442 = vmatpush.bf16.msra.mxu0 %v377
    %443 = vmatpush.bf16.msra.mxu0 %v375
    %444 = vmatmul.bf16.gmra.mxu0 %v257
    %v445 = vpop.f32.mrf.mxu0
    %v446 = vadd.f32 %v433, %v445
    %v447 = vpop.f32.mrf.mxu0
    %448 = vdwg.mxu0
    %449 = vmatpush.bf16.msra.mxu0 %v374
    %450 = vmatpush.bf16.msra.mxu0 %v372
    %451 = vmatpush.bf16.msra.mxu0 %v370
    %452 = vmatpush.bf16.msra.mxu0 %v368
    %453 = vmatpush.bf16.msra.mxu0 %v366
    %454 = vmatpush.bf16.msra.mxu0 %v364
    %455 = vmatpush.bf16.msra.mxu0 %v362
    %456 = vmatpush.bf16.msra.mxu0 %v360
    %457 = vmatmul.bf16.gmra.mxu0 %v256
    %v458 = vpop.f32.mrf.mxu0
    %v459 = vadd.f32 %v260, %v458
    %v460 = vpop.f32.mrf.mxu0
    %461 = vdwg.mxu0
    %462 = vmatpush.bf16.msra.mxu0 %v390
    %463 = vmatpush.bf16.msra.mxu0 %v388
    %464 = vmatpush.bf16.msra.mxu0 %v386
    %465 = vmatpush.bf16.msra.mxu0 %v384
    %466 = vmatpush.bf16.msra.mxu0 %v382
    %467 = vmatpush.bf16.msra.mxu0 %v380
    %468 = vmatpush.bf16.msra.mxu0 %v378
    %469 = vmatpush.bf16.msra.mxu0 %v376
    %470 = vmatmul.bf16.gmra.mxu0 %v257
    %v471 = vpop.f32.mrf.mxu0
    %v472 = vadd.f32 %v459, %v471
    %v473 = vpop.f32.mrf.mxu0
    %474 = vdwg.mxu0
    %v475 = vmax.f32 %v446, 0.0
    %v476 = vmax.f32 %v472, 0.0
    %v477 = vpack.c.bf16 %v475, %v475
    %v478 = vpack.c.bf16 %v476, %v476
    %v480 = vperm.slane %v140, 0
    %v514 = vunpack.c.l.b16 %v106
    %v515 = vunpack.c.l.b16 %v107
    %v516 = vunpack.c.l.b16 %v108
    %v517 = vunpack.c.l.b16 %v109
    %v518 = vunpack.c.l.b16 %v110
    %v519 = vunpack.c.l.b16 %v111
    %v520 = vunpack.c.l.b16 %v112
    %v521 = vunpack.c.l.b16 %v113
    %v522 = vunpack.c.l.b16 %v114
    %v523 = vunpack.c.l.b16 %v115
    %v524 = vunpack.c.l.b16 %v116
    %v525 = vunpack.c.l.b16 %v117
    %v526 = vunpack.c.l.b16 %v118
    %v527 = vunpack.c.l.b16 %v119
    %v528 = vunpack.c.l.b16 %v120
    %v529 = vunpack.c.l.b16 %v121
    %v530 = vunpack.c.l.b16 %v122
    %v531 = vunpack.c.l.b16 %v123
    %v532 = vunpack.c.l.b16 %v124
    %v533 = vunpack.c.l.b16 %v125
    %v534 = vunpack.c.l.b16 %v126
    %v535 = vunpack.c.l.b16 %v127
    %v536 = vunpack.c.l.b16 %v128
    %v537 = vunpack.c.l.b16 %v129
    %v538 = vunpack.c.l.b16 %v130
    %v539 = vunpack.c.l.b16 %v131
    %v540 = vunpack.c.l.b16 %v132
    %v541 = vunpack.c.l.b16 %v133
    %v542 = vunpack.c.l.b16 %v134
    %v543 = vunpack.c.l.b16 %v135
    %v544 = vunpack.c.l.b16 %v136
    %v545 = vunpack.c.l.b16 %v137
    %v546 = vpack.c.b16 %v515, %v514
    %v547 = vpack.c.b16 %v517, %v516
    %v548 = vpack.c.b16 %v519, %v518
    %v549 = vpack.c.b16 %v521, %v520
    %v550 = vpack.c.b16 %v523, %v522
    %v551 = vpack.c.b16 %v525, %v524
    %v552 = vpack.c.b16 %v527, %v526
    %v553 = vpack.c.b16 %v529, %v528
    %v554 = vpack.c.b16 %v531, %v530
    %v555 = vpack.c.b16 %v533, %v532
    %v556 = vpack.c.b16 %v535, %v534
    %v557 = vpack.c.b16 %v537, %v536
    %v558 = vpack.c.b16 %v539, %v538
    %v559 = vpack.c.b16 %v541, %v540
    %v560 = vpack.c.b16 %v543, %v542
    %v561 = vpack.c.b16 %v545, %v544
    %578 = vmatpush.bf16.msra.mxu0 %v553
    %579 = vmatpush.bf16.msra.mxu0 %v552
    %580 = vmatpush.bf16.msra.mxu0 %v551
    %581 = vmatpush.bf16.msra.mxu0 %v550
    %582 = vmatpush.bf16.msra.mxu0 %v549
    %583 = vmatpush.bf16.msra.mxu0 %v548
    %584 = vmatpush.bf16.msra.mxu0 %v547
    %585 = vmatpush.bf16.msra.mxu0 %v546
    %586 = vmatmul.bf16.gmra.mxu0 %v477
    %v587 = vpop.f32.mrf.mxu0
    %v588 = vadd.f32 %v480, %v587
    %v589 = vpop.f32.mrf.mxu0
    %590 = vdwg.mxu0
    %591 = vmatpush.bf16.msra.mxu0 %v561
    %592 = vmatpush.bf16.msra.mxu0 %v560
    %593 = vmatpush.bf16.msra.mxu0 %v559
    %594 = vmatpush.bf16.msra.mxu0 %v558
    %595 = vmatpush.bf16.msra.mxu0 %v557
    %596 = vmatpush.bf16.msra.mxu0 %v556
    %597 = vmatpush.bf16.msra.mxu0 %v555
    %598 = vmatpush.bf16.msra.mxu0 %v554
    %599 = vmatmul.bf16.gmra.mxu0 %v478
    %v600 = vpop.f32.mrf.mxu0
    %v601 = vadd.f32 %v588, %v600
    %v602 = vpop.f32.mrf.mxu0
    %603 = vdwg.mxu0
    %v604 = vtanh.pop %v601
    %v605 = vmul.f32 %v604, 2.0
    %606 = vst [vmem:[#allocation8] sm:$0xff] %v605
    // Predicated region
    $region26: #{tpu_custom_call.1} parent=1 // pred_check
      _
    $region27: #{tpu_custom_call.1} parent=1 // pred_check_branch
      %608 = sbr.rel (0) target = $region29
    $region28: #{tpu_custom_call.1} parent=1 // pred_region
      %610 = vsyncadd [#allocation4], 0
      %s612 = sshll.u32 [#allocation8], 4
      %s613 = int_to_ptr.vmem [resolvable:$true] %s612
      %s614 = sshll.u32 %s3, 4
      %s615 = int_to_ptr.hbm [resolvable:$true] %s614
      %617 = dma.vmem_to_hbm [thread:$0]  %s613, 128, %s615, [#allocation4]
    $region29: #{tpu_custom_call.1} parent=1 // pred_fallthru
      _
    // Predicated region
    $region30: #{tpu_custom_call.1} parent=1 // pred_check
      _
    $region31: #{tpu_custom_call.1} parent=1 // pred_check_branch
      %619 = sbr.rel (0) target = $region33
    $region32: #{tpu_custom_call.1} parent=1 // pred_region
      %621 = dma.done [#allocation4], 128
    $region33: #{tpu_custom_call.1} parent=1 // pred_fallthru
      _
    %622 = vsyncpa [#allocation3], 1
    %623 = vsyncpa [#allocation6], 1
    %624 = vsyncpa [#allocation4], 1

</llo_original>
